<compile_context>
chip_gen: v7x
topology: tpu7x:2x2x1
jax: 0.10.0
libtpu: 0.0.40
codegen_flags: <defaults>
</compile_context>

<pallas_src>
import functools

import jax
import jax.numpy as jnp
from jax.experimental import pallas as pl
from jax.experimental.pallas import tpu as pltpu


def _round_up(x, m):
    return (x + m - 1) // m * m


def _ssim_kernel(dr_ref, x_ref, y_ref, o_ref, *, win, k1, k2, Hp, Wp, Ho, Wo,
                 reduced):
    """One grid step: Bt images (channel squeezed), roll-based separable box
    filter + SSIM map (+ per-image reduction)."""
    x = x_ref[...].astype(jnp.float32)          # (Bt, Hp, Wp)
    y = y_ref[...].astype(jnp.float32)          # (Bt, Hp, Wp)
    dr = dr_ref[...]                            # (Bt, 1, 1)
    c1 = (k1 * dr) ** 2
    c2 = (k2 * dr) ** 2

    np_ = win * win
    inv_np = 1.0 / float(np_)
    cov_norm = float(np_) / float(np_ - 1)

    def lshift(z, k, axis):
        # Circular left shift by k along sublane (axis=1) or lane (axis=2).
        size = Hp if axis == 1 else Wp
        return pltpu.roll(z, shift=size - k, axis=axis)

    def window_sum(z, axis):
        # out[i] = sum_{k=0..win-1} z[i+k]; valid for i < size - win + 1
        # (no wraparound reaches the valid region since size >= orig dim).
        # Log-step doubling: for win=7 -> 4 rolls + 4 adds per axis.
        sums = {1: z}
        m = 1
        while 2 * m <= win:
            sums[2 * m] = sums[m] + lshift(sums[m], m, axis)
            m *= 2
        out = None
        off, rem, p = 0, win, m
        while rem > 0:
            while p > rem:
                p //= 2
            piece = sums[p] if off == 0 else lshift(sums[p], off, axis)
            out = piece if out is None else out + piece
            off += p
            rem -= p
        return out

    def box(z):
        # Separable box mean: sublane pass then lane pass (both on the XLU).
        return window_sum(window_sum(z, axis=1), axis=2) * inv_np

    ux = box(x)
    uy = box(y)
    uxx = box(x * x)
    uyy = box(y * y)
    uxy = box(x * y)

    vx = cov_norm * (uxx - ux * ux)
    vy = cov_norm * (uyy - uy * uy)
    vxy = cov_norm * (uxy - ux * uy)

    a1 = 2.0 * ux * uy + c1
    a2 = 2.0 * vxy + c2
    b1 = ux * ux + uy * uy + c1
    b2 = vx + vy + c2

    # Mask invalid (padded / wrapped) rows & lanes BEFORE the divide.
    rows = jax.lax.broadcasted_iota(jnp.int32, a1.shape, 1)
    cols = jax.lax.broadcasted_iota(jnp.int32, a1.shape, 2)
    valid = (rows < Ho) & (cols < Wo)
    num = jnp.where(valid, a1 * a2, 0.0)
    den = jnp.where(valid, b1 * b2, 1.0)

    # EUP approximate reciprocal + two Newton refinements (rel err << 1e-7).
    inv = pl.reciprocal(den, approx=True)
    inv = inv * (2.0 - den * inv)
    inv = inv * (2.0 - den * inv)
    s = num * inv                               # zeros outside the valid region

    if reduced:
        # Per-image sum of the SSIM map -> (Bt, 1, 1); mean taken in JAX.
        o_ref[...] = jnp.sum(jnp.sum(s, axis=2, keepdims=True),
                             axis=1, keepdims=True)
    else:
        o_ref[...] = s                          # lane-dense (Hp, Wp) store


def _pick_batch_tile(N, Hp, Wp):
    """Largest divisor of N that keeps per-step live VMEM within ~20 MiB
    (inputs double-buffered + ~14 live f32 planes of temps) and, when
    possible, leaves >= 2 grid steps so both v7x TensorCores get work."""
    per_img_bytes = 18 * Hp * Wp * 4
    cap = max(1, (20 << 20) // per_img_bytes)
    if N >= 2:
        cap = min(cap, max(1, N // 2))
    bt = 1
    for d in range(1, N + 1):
        if N % d == 0 and d <= cap:
            bt = d
    return bt


def ssim_loss(X, Y, data_range, *, win_size=7, k1=0.01, k2=0.03, reduced=True):
    """Pallas implementation of SSIMLoss.forward.

    X, Y: (N, 1, H, W) float32 (NCHW). data_range: (N,) float32.
    """
    N, C, H, W = X.shape
    assert C == 1, "SSIM window has 1 input channel; inputs must be (N,1,H,W)."
    Ho = H - win_size + 1
    Wo = W - win_size + 1
    assert Ho >= 1 and Wo >= 1, "image smaller than SSIM window"

    # Pad H to a sublane multiple and W to a lane multiple so the roll-based
    # box filter and the output stores are fully (8,128)-aligned.
    Hp = _round_up(H, 8)
    Wp = _round_up(W, 128)
    pad = ((0, 0), (0, 0), (0, Hp - H), (0, Wp - W))
    Xp = jnp.pad(X.astype(jnp.float32), pad)
    Yp = jnp.pad(Y.astype(jnp.float32), pad)

    Bt = _pick_batch_tile(N, Hp, Wp)
    G = N // Bt

    kernel = functools.partial(
        _ssim_kernel, win=win_size, k1=float(k1), k2=float(k2),
        Hp=Hp, Wp=Wp, Ho=Ho, Wo=Wo, reduced=reduced)

    dr = data_range.astype(jnp.float32).reshape(N, 1, 1)

    in_specs = [
        pl.BlockSpec((Bt, 1, 1), lambda n: (n, 0, 0)),             # data_range
        pl.BlockSpec((Bt, None, Hp, Wp), lambda n: (n, 0, 0, 0)),  # X (C squeezed)
        pl.BlockSpec((Bt, None, Hp, Wp), lambda n: (n, 0, 0, 0)),  # Y (C squeezed)
    ]
    if reduced:
        out_shape = jax.ShapeDtypeStruct((N, 1, 1), jnp.float32)
        out_specs = pl.BlockSpec((Bt, 1, 1), lambda n: (n, 0, 0))
    else:
        # Lane-dense padded SSIM map; trimmed to (N,1,Ho,Wo) in the wrapper.
        out_shape = jax.ShapeDtypeStruct((N, 1, Hp, Wp), jnp.float32)
        out_specs = pl.BlockSpec((Bt, None, Hp, Wp), lambda n: (n, 0, 0, 0))

    out = pl.pallas_call(
        kernel,
        out_shape=out_shape,
        grid=(G,),
        in_specs=in_specs,
        out_specs=out_specs,
        compiler_params=pltpu.CompilerParams(
            dimension_semantics=("parallel",),
            vmem_limit_bytes=32 * 1024 * 1024),
    )(dr, Xp, Yp)

    if reduced:
        return 1.0 - jnp.sum(out) / float(N * Ho * Wo)
    return 1.0 - out[:, :, :Ho, :Wo]


def _ssim_loss_ref(X, Y, data_range, *, win_size=7, k1=0.01, k2=0.03,
                   reduced=True):
    """Pure-JAX reference mirroring the PyTorch module (exact f32 box sums)."""
    N, C, H, W = X.shape
    NP = win_size * win_size
    cov_norm = NP / (NP - 1)
    Ho, Wo = H - win_size + 1, W - win_size + 1

    def box(Z):
        acc = jnp.zeros((N, C, Ho, Wo), jnp.float32)
        for a in range(win_size):
            for b in range(win_size):
                acc = acc + Z[:, :, a:a + Ho, b:b + Wo]
        return acc / NP

    dr = data_range[:, None, None, None]
    C1 = (k1 * dr) ** 2
    C2 = (k2 * dr) ** 2
    ux, uy = box(X), box(Y)
    uxx, uyy, uxy = box(X * X), box(Y * Y), box(X * Y)
    vx = cov_norm * (uxx - ux * ux)
    vy = cov_norm * (uyy - uy * uy)
    vxy = cov_norm * (uxy - ux * uy)
    A1, A2 = 2 * ux * uy + C1, 2 * vxy + C2
    B1, B2 = ux ** 2 + uy ** 2 + C1, vx + vy + C2
    S = A1 * A2 / (B1 * B2)
    return 1 - S.mean() if reduced else 1 - S


if __name__ == "__main__":
    key = jax.random.PRNGKey(0)
    kx1, ky1, kd1, kx2, ky2, kd2 = jax.random.split(key, 6)

    # Case 1: already (8,128)-aligned image.
    N1, H1, W1 = 2, 16, 128
    X1 = jax.random.uniform(kx1, (N1, 1, H1, W1), dtype=jnp.float32)
    Y1 = jax.random.uniform(ky1, (N1, 1, H1, W1), dtype=jnp.float32)
    dr1 = jax.random.uniform(kd1, (N1,), dtype=jnp.float32,
                             minval=0.5, maxval=1.5)

    out1 = jax.block_until_ready(ssim_loss(X1, Y1, dr1, reduced=True))
    ref1 = _ssim_loss_ref(X1, Y1, dr1, reduced=True)
    assert jnp.allclose(out1, ref1, rtol=1e-5, atol=1e-5), (out1, ref1)

    map1 = jax.block_until_ready(ssim_loss(X1, Y1, dr1, reduced=False))
    mref1 = _ssim_loss_ref(X1, Y1, dr1, reduced=False)
    assert map1.shape == (N1, 1, H1 - 6, W1 - 6)
    assert jnp.allclose(map1, mref1, rtol=1e-5, atol=1e-5)

    # Case 2: non-aligned H and W (wrapper pads to (16, 128)), Bt = 2 per step.
    N2, H2, W2 = 4, 12, 20
    X2 = jax.random.uniform(kx2, (N2, 1, H2, W2), dtype=jnp.float32)
    Y2 = jax.random.uniform(ky2, (N2, 1, H2, W2), dtype=jnp.float32)
    dr2 = jax.random.uniform(kd2, (N2,), dtype=jnp.float32,
                             minval=0.5, maxval=1.5)

    out2 = jax.block_until_ready(ssim_loss(X2, Y2, dr2, reduced=True))
    ref2 = _ssim_loss_ref(X2, Y2, dr2, reduced=True)
    assert jnp.allclose(out2, ref2, rtol=1e-5, atol=1e-5), (out2, ref2)

    map2 = jax.block_until_ready(ssim_loss(X2, Y2, dr2, reduced=False))
    mref2 = _ssim_loss_ref(X2, Y2, dr2, reduced=False)
    assert map2.shape == (N2, 1, H2 - 6, W2 - 6)
    assert jnp.allclose(map2, mref2, rtol=1e-5, atol=1e-5)

    print("KERNEL_OK")
</pallas_src>

<mosaic_0001>
module attributes {stable_mosaic.version = 11 : i64} {
  func.func @_ssim_kernel(%arg0: i32, %arg1: memref<1x1x1xf32, #tpu.memory_space<vmem>>, %arg2: memref<1x1x16x128xf32, #tpu.memory_space<vmem>>, %arg3: memref<1x1x16x128xf32, #tpu.memory_space<vmem>>, %arg4: memref<1x1x1xf32, #tpu.memory_space<vmem>>) attributes {dimension_semantics = [#tpu.dimension_semantics<parallel>], iteration_bounds = array<i64: 2>, scalar_prefetch = 0 : i64, scratch_operands = 0 : i64, tpu.core_type = #tpu.core_type<tc>, window_params = [{transform_indices = @transform_0, window_bounds = array<i64: 1, 1, 1>}, {transform_indices = @transform_1, window_bounds = array<i64: 1, 1, 16, 128>}, {transform_indices = @transform_2, window_bounds = array<i64: 1, 1, 16, 128>}, {transform_indices = @transform_3, window_bounds = array<i64: 1, 1, 1>}]} {
    %c0 = arith.constant 0 : index
    %c0_0 = arith.constant 0 : index
    %c0_1 = arith.constant 0 : index
    %c0_2 = arith.constant 0 : index
    %0 = vector.load %arg2[%c0, %c0_0, %c0_1, %c0_2] : memref<1x1x16x128xf32, #tpu.memory_space<vmem>>, vector<1x1x16x128xf32>
    %1 = vector.shape_cast %0 : vector<1x1x16x128xf32> to vector<1x16x128xf32>
    %c0_3 = arith.constant 0 : index
    %c0_4 = arith.constant 0 : index
    %c0_5 = arith.constant 0 : index
    %c0_6 = arith.constant 0 : index
    %2 = vector.load %arg3[%c0_3, %c0_4, %c0_5, %c0_6] : memref<1x1x16x128xf32, #tpu.memory_space<vmem>>, vector<1x1x16x128xf32>
    %3 = vector.shape_cast %2 : vector<1x1x16x128xf32> to vector<1x16x128xf32>
    %c0_7 = arith.constant 0 : index
    %c0_8 = arith.constant 0 : index
    %c0_9 = arith.constant 0 : index
    %4 = vector.load %arg1[%c0_7, %c0_8, %c0_9] : memref<1x1x1xf32, #tpu.memory_space<vmem>>, vector<1x1x1xf32>
    %cst = arith.constant 0.00999999977 : f32
    %5 = vector.broadcast %cst : f32 to vector<1x1x1xf32>
    %6 = arith.mulf %5, %4 : vector<1x1x1xf32>
    %7 = arith.mulf %6, %6 : vector<1x1x1xf32>
    %cst_10 = arith.constant 3.000000e-02 : f32
    %8 = vector.broadcast %cst_10 : f32 to vector<1x1x1xf32>
    %9 = arith.mulf %8, %4 : vector<1x1x1xf32>
    %10 = arith.mulf %9, %9 : vector<1x1x1xf32>
    %c15_i32 = arith.constant 15 : i32
    %11 = tpu.dynamic_rotate %1 by %c15_i32 dim 1 : vector<1x16x128xf32>, i32 -> vector<1x16x128xf32>
    %12 = arith.addf %1, %11 : vector<1x16x128xf32>
    %c14_i32 = arith.constant 14 : i32
    %13 = tpu.dynamic_rotate %12 by %c14_i32 dim 1 : vector<1x16x128xf32>, i32 -> vector<1x16x128xf32>
    %14 = arith.addf %12, %13 : vector<1x16x128xf32>
    %c12_i32 = arith.constant 12 : i32
    %15 = tpu.dynamic_rotate %12 by %c12_i32 dim 1 : vector<1x16x128xf32>, i32 -> vector<1x16x128xf32>
    %16 = arith.addf %14, %15 : vector<1x16x128xf32>
    %c10_i32 = arith.constant 10 : i32
    %17 = tpu.dynamic_rotate %1 by %c10_i32 dim 1 : vector<1x16x128xf32>, i32 -> vector<1x16x128xf32>
    %18 = arith.addf %16, %17 : vector<1x16x128xf32>
    %c127_i32 = arith.constant 127 : i32
    %19 = tpu.dynamic_rotate %18 by %c127_i32 dim 2 : vector<1x16x128xf32>, i32 -> vector<1x16x128xf32>
    %20 = arith.addf %18, %19 : vector<1x16x128xf32>
    %c126_i32 = arith.constant 126 : i32
    %21 = tpu.dynamic_rotate %20 by %c126_i32 dim 2 : vector<1x16x128xf32>, i32 -> vector<1x16x128xf32>
    %22 = arith.addf %20, %21 : vector<1x16x128xf32>
    %c124_i32 = arith.constant 124 : i32
    %23 = tpu.dynamic_rotate %20 by %c124_i32 dim 2 : vector<1x16x128xf32>, i32 -> vector<1x16x128xf32>
    %24 = arith.addf %22, %23 : vector<1x16x128xf32>
    %c122_i32 = arith.constant 122 : i32
    %25 = tpu.dynamic_rotate %18 by %c122_i32 dim 2 : vector<1x16x128xf32>, i32 -> vector<1x16x128xf32>
    %26 = arith.addf %24, %25 : vector<1x16x128xf32>
    %cst_11 = arith.constant 0.0204081628 : f32
    %27 = vector.broadcast %cst_11 : f32 to vector<1x16x128xf32>
    %28 = arith.mulf %26, %27 : vector<1x16x128xf32>
    %c15_i32_12 = arith.constant 15 : i32
    %29 = tpu.dynamic_rotate %3 by %c15_i32_12 dim 1 : vector<1x16x128xf32>, i32 -> vector<1x16x128xf32>
    %30 = arith.addf %3, %29 : vector<1x16x128xf32>
    %c14_i32_13 = arith.constant 14 : i32
    %31 = tpu.dynamic_rotate %30 by %c14_i32_13 dim 1 : vector<1x16x128xf32>, i32 -> vector<1x16x128xf32>
    %32 = arith.addf %30, %31 : vector<1x16x128xf32>
    %c12_i32_14 = arith.constant 12 : i32
    %33 = tpu.dynamic_rotate %30 by %c12_i32_14 dim 1 : vector<1x16x128xf32>, i32 -> vector<1x16x128xf32>
    %34 = arith.addf %32, %33 : vector<1x16x128xf32>
    %c10_i32_15 = arith.constant 10 : i32
    %35 = tpu.dynamic_rotate %3 by %c10_i32_15 dim 1 : vector<1x16x128xf32>, i32 -> vector<1x16x128xf32>
    %36 = arith.addf %34, %35 : vector<1x16x128xf32>
    %c127_i32_16 = arith.constant 127 : i32
    %37 = tpu.dynamic_rotate %36 by %c127_i32_16 dim 2 : vector<1x16x128xf32>, i32 -> vector<1x16x128xf32>
    %38 = arith.addf %36, %37 : vector<1x16x128xf32>
    %c126_i32_17 = arith.constant 126 : i32
    %39 = tpu.dynamic_rotate %38 by %c126_i32_17 dim 2 : vector<1x16x128xf32>, i32 -> vector<1x16x128xf32>
    %40 = arith.addf %38, %39 : vector<1x16x128xf32>
    %c124_i32_18 = arith.constant 124 : i32
    %41 = tpu.dynamic_rotate %38 by %c124_i32_18 dim 2 : vector<1x16x128xf32>, i32 -> vector<1x16x128xf32>
    %42 = arith.addf %40, %41 : vector<1x16x128xf32>
    %c122_i32_19 = arith.constant 122 : i32
    %43 = tpu.dynamic_rotate %36 by %c122_i32_19 dim 2 : vector<1x16x128xf32>, i32 -> vector<1x16x128xf32>
    %44 = arith.addf %42, %43 : vector<1x16x128xf32>
    %cst_20 = arith.constant 0.0204081628 : f32
    %45 = vector.broadcast %cst_20 : f32 to vector<1x16x128xf32>
    %46 = arith.mulf %44, %45 : vector<1x16x128xf32>
    %47 = arith.mulf %1, %1 : vector<1x16x128xf32>
    %c15_i32_21 = arith.constant 15 : i32
    %48 = tpu.dynamic_rotate %47 by %c15_i32_21 dim 1 : vector<1x16x128xf32>, i32 -> vector<1x16x128xf32>
    %49 = arith.addf %47, %48 : vector<1x16x128xf32>
    %c14_i32_22 = arith.constant 14 : i32
    %50 = tpu.dynamic_rotate %49 by %c14_i32_22 dim 1 : vector<1x16x128xf32>, i32 -> vector<1x16x128xf32>
    %51 = arith.addf %49, %50 : vector<1x16x128xf32>
    %c12_i32_23 = arith.constant 12 : i32
    %52 = tpu.dynamic_rotate %49 by %c12_i32_23 dim 1 : vector<1x16x128xf32>, i32 -> vector<1x16x128xf32>
    %53 = arith.addf %51, %52 : vector<1x16x128xf32>
    %c10_i32_24 = arith.constant 10 : i32
    %54 = tpu.dynamic_rotate %47 by %c10_i32_24 dim 1 : vector<1x16x128xf32>, i32 -> vector<1x16x128xf32>
    %55 = arith.addf %53, %54 : vector<1x16x128xf32>
    %c127_i32_25 = arith.constant 127 : i32
    %56 = tpu.dynamic_rotate %55 by %c127_i32_25 dim 2 : vector<1x16x128xf32>, i32 -> vector<1x16x128xf32>
    %57 = arith.addf %55, %56 : vector<1x16x128xf32>
    %c126_i32_26 = arith.constant 126 : i32
    %58 = tpu.dynamic_rotate %57 by %c126_i32_26 dim 2 : vector<1x16x128xf32>, i32 -> vector<1x16x128xf32>
    %59 = arith.addf %57, %58 : vector<1x16x128xf32>
    %c124_i32_27 = arith.constant 124 : i32
    %60 = tpu.dynamic_rotate %57 by %c124_i32_27 dim 2 : vector<1x16x128xf32>, i32 -> vector<1x16x128xf32>
    %61 = arith.addf %59, %60 : vector<1x16x128xf32>
    %c122_i32_28 = arith.constant 122 : i32
    %62 = tpu.dynamic_rotate %55 by %c122_i32_28 dim 2 : vector<1x16x128xf32>, i32 -> vector<1x16x128xf32>
    %63 = arith.addf %61, %62 : vector<1x16x128xf32>
    %cst_29 = arith.constant 0.0204081628 : f32
    %64 = vector.broadcast %cst_29 : f32 to vector<1x16x128xf32>
    %65 = arith.mulf %63, %64 : vector<1x16x128xf32>
    %66 = arith.mulf %3, %3 : vector<1x16x128xf32>
    %c15_i32_30 = arith.constant 15 : i32
    %67 = tpu.dynamic_rotate %66 by %c15_i32_30 dim 1 : vector<1x16x128xf32>, i32 -> vector<1x16x128xf32>
    %68 = arith.addf %66, %67 : vector<1x16x128xf32>
    %c14_i32_31 = arith.constant 14 : i32
    %69 = tpu.dynamic_rotate %68 by %c14_i32_31 dim 1 : vector<1x16x128xf32>, i32 -> vector<1x16x128xf32>
    %70 = arith.addf %68, %69 : vector<1x16x128xf32>
    %c12_i32_32 = arith.constant 12 : i32
    %71 = tpu.dynamic_rotate %68 by %c12_i32_32 dim 1 : vector<1x16x128xf32>, i32 -> vector<1x16x128xf32>
    %72 = arith.addf %70, %71 : vector<1x16x128xf32>
    %c10_i32_33 = arith.constant 10 : i32
    %73 = tpu.dynamic_rotate %66 by %c10_i32_33 dim 1 : vector<1x16x128xf32>, i32 -> vector<1x16x128xf32>
    %74 = arith.addf %72, %73 : vector<1x16x128xf32>
    %c127_i32_34 = arith.constant 127 : i32
    %75 = tpu.dynamic_rotate %74 by %c127_i32_34 dim 2 : vector<1x16x128xf32>, i32 -> vector<1x16x128xf32>
    %76 = arith.addf %74, %75 : vector<1x16x128xf32>
    %c126_i32_35 = arith.constant 126 : i32
    %77 = tpu.dynamic_rotate %76 by %c126_i32_35 dim 2 : vector<1x16x128xf32>, i32 -> vector<1x16x128xf32>
    %78 = arith.addf %76, %77 : vector<1x16x128xf32>
    %c124_i32_36 = arith.constant 124 : i32
    %79 = tpu.dynamic_rotate %76 by %c124_i32_36 dim 2 : vector<1x16x128xf32>, i32 -> vector<1x16x128xf32>
    %80 = arith.addf %78, %79 : vector<1x16x128xf32>
    %c122_i32_37 = arith.constant 122 : i32
    %81 = tpu.dynamic_rotate %74 by %c122_i32_37 dim 2 : vector<1x16x128xf32>, i32 -> vector<1x16x128xf32>
    %82 = arith.addf %80, %81 : vector<1x16x128xf32>
    %cst_38 = arith.constant 0.0204081628 : f32
    %83 = vector.broadcast %cst_38 : f32 to vector<1x16x128xf32>
    %84 = arith.mulf %82, %83 : vector<1x16x128xf32>
    %85 = arith.mulf %1, %3 : vector<1x16x128xf32>
    %c15_i32_39 = arith.constant 15 : i32
    %86 = tpu.dynamic_rotate %85 by %c15_i32_39 dim 1 : vector<1x16x128xf32>, i32 -> vector<1x16x128xf32>
    %87 = arith.addf %85, %86 : vector<1x16x128xf32>
    %c14_i32_40 = arith.constant 14 : i32
    %88 = tpu.dynamic_rotate %87 by %c14_i32_40 dim 1 : vector<1x16x128xf32>, i32 -> vector<1x16x128xf32>
    %89 = arith.addf %87, %88 : vector<1x16x128xf32>
    %c12_i32_41 = arith.constant 12 : i32
    %90 = tpu.dynamic_rotate %87 by %c12_i32_41 dim 1 : vector<1x16x128xf32>, i32 -> vector<1x16x128xf32>
    %91 = arith.addf %89, %90 : vector<1x16x128xf32>
    %c10_i32_42 = arith.constant 10 : i32
    %92 = tpu.dynamic_rotate %85 by %c10_i32_42 dim 1 : vector<1x16x128xf32>, i32 -> vector<1x16x128xf32>
    %93 = arith.addf %91, %92 : vector<1x16x128xf32>
    %c127_i32_43 = arith.constant 127 : i32
    %94 = tpu.dynamic_rotate %93 by %c127_i32_43 dim 2 : vector<1x16x128xf32>, i32 -> vector<1x16x128xf32>
    %95 = arith.addf %93, %94 : vector<1x16x128xf32>
    %c126_i32_44 = arith.constant 126 : i32
    %96 = tpu.dynamic_rotate %95 by %c126_i32_44 dim 2 : vector<1x16x128xf32>, i32 -> vector<1x16x128xf32>
    %97 = arith.addf %95, %96 : vector<1x16x128xf32>
    %c124_i32_45 = arith.constant 124 : i32
    %98 = tpu.dynamic_rotate %95 by %c124_i32_45 dim 2 : vector<1x16x128xf32>, i32 -> vector<1x16x128xf32>
    %99 = arith.addf %97, %98 : vector<1x16x128xf32>
    %c122_i32_46 = arith.constant 122 : i32
    %100 = tpu.dynamic_rotate %93 by %c122_i32_46 dim 2 : vector<1x16x128xf32>, i32 -> vector<1x16x128xf32>
    %101 = arith.addf %99, %100 : vector<1x16x128xf32>
    %cst_47 = arith.constant 0.0204081628 : f32
    %102 = vector.broadcast %cst_47 : f32 to vector<1x16x128xf32>
    %103 = arith.mulf %101, %102 : vector<1x16x128xf32>
    %104 = arith.mulf %28, %28 : vector<1x16x128xf32>
    %105 = arith.subf %65, %104 : vector<1x16x128xf32>
    %cst_48 = arith.constant 1.02083337 : f32
    %106 = vector.broadcast %cst_48 : f32 to vector<1x16x128xf32>
    %107 = arith.mulf %106, %105 : vector<1x16x128xf32>
    %108 = arith.mulf %46, %46 : vector<1x16x128xf32>
    %109 = arith.subf %84, %108 : vector<1x16x128xf32>
    %cst_49 = arith.constant 1.02083337 : f32
    %110 = vector.broadcast %cst_49 : f32 to vector<1x16x128xf32>
    %111 = arith.mulf %110, %109 : vector<1x16x128xf32>
    %112 = arith.mulf %28, %46 : vector<1x16x128xf32>
    %113 = arith.subf %103, %112 : vector<1x16x128xf32>
    %cst_50 = arith.constant 1.02083337 : f32
    %114 = vector.broadcast %cst_50 : f32 to vector<1x16x128xf32>
    %115 = arith.mulf %114, %113 : vector<1x16x128xf32>
    %cst_51 = arith.constant 2.000000e+00 : f32
    %116 = vector.broadcast %cst_51 : f32 to vector<1x16x128xf32>
    %117 = arith.mulf %116, %28 : vector<1x16x128xf32>
    %118 = arith.mulf %117, %46 : vector<1x16x128xf32>
    %119 = vector.broadcast %7 : vector<1x1x1xf32> to vector<1x16x128xf32>
    %120 = arith.addf %118, %119 : vector<1x16x128xf32>
    %cst_52 = arith.constant 2.000000e+00 : f32
    %121 = vector.broadcast %cst_52 : f32 to vector<1x16x128xf32>
    %122 = arith.mulf %121, %115 : vector<1x16x128xf32>
    %123 = vector.broadcast %10 : vector<1x1x1xf32> to vector<1x16x128xf32>
    %124 = arith.addf %122, %123 : vector<1x16x128xf32>
    %125 = arith.mulf %28, %28 : vector<1x16x128xf32>
    %126 = arith.mulf %46, %46 : vector<1x16x128xf32>
    %127 = arith.addf %125, %126 : vector<1x16x128xf32>
    %128 = vector.broadcast %7 : vector<1x1x1xf32> to vector<1x16x128xf32>
    %129 = arith.addf %127, %128 : vector<1x16x128xf32>
    %130 = arith.addf %107, %111 : vector<1x16x128xf32>
    %131 = vector.broadcast %10 : vector<1x1x1xf32> to vector<1x16x128xf32>
    %132 = arith.addf %130, %131 : vector<1x16x128xf32>
    %133 = tpu.iota {dimensions = array<i32: 1>} : vector<1x16x128xi32>
    %134 = tpu.iota {dimensions = array<i32: 2>} : vector<1x16x128xi32>
    %c10_i32_53 = arith.constant 10 : i32
    %135 = vector.broadcast %c10_i32_53 : i32 to vector<1x16x128xi32>
    %136 = arith.cmpi slt, %133, %135 : vector<1x16x128xi32>
    %c122_i32_54 = arith.constant 122 : i32
    %137 = vector.broadcast %c122_i32_54 : i32 to vector<1x16x128xi32>
    %138 = arith.cmpi slt, %134, %137 : vector<1x16x128xi32>
    %139 = arith.andi %136, %138 : vector<1x16x128xi1>
    %140 = arith.mulf %120, %124 : vector<1x16x128xf32>
    %cst_55 = arith.constant 0.000000e+00 : f32
    %141 = vector.broadcast %cst_55 : f32 to vector<1x16x128xf32>
    %142 = arith.select %139, %140, %141 : vector<1x16x128xi1>, vector<1x16x128xf32>
    %143 = arith.mulf %129, %132 : vector<1x16x128xf32>
    %cst_56 = arith.constant 1.000000e+00 : f32
    %144 = vector.broadcast %cst_56 : f32 to vector<1x16x128xf32>
    %145 = arith.select %139, %143, %144 : vector<1x16x128xi1>, vector<1x16x128xf32>
    %146 = tpu.reciprocal %145 {approx = true} : vector<1x16x128xf32> -> vector<1x16x128xf32>
    %147 = arith.mulf %145, %146 : vector<1x16x128xf32>
    %cst_57 = arith.constant 2.000000e+00 : f32
    %148 = vector.broadcast %cst_57 : f32 to vector<1x16x128xf32>
    %149 = arith.subf %148, %147 : vector<1x16x128xf32>
    %150 = arith.mulf %146, %149 : vector<1x16x128xf32>
    %151 = arith.mulf %145, %150 : vector<1x16x128xf32>
    %cst_58 = arith.constant 2.000000e+00 : f32
    %152 = vector.broadcast %cst_58 : f32 to vector<1x16x128xf32>
    %153 = arith.subf %152, %151 : vector<1x16x128xf32>
    %154 = arith.mulf %150, %153 : vector<1x16x128xf32>
    %155 = arith.mulf %142, %154 : vector<1x16x128xf32>
    %cst_59 = arith.constant dense<0.000000e+00> : vector<1x16xf32>
    %156 = vector.multi_reduction <add>, %155, %cst_59 [2] : vector<1x16x128xf32> to vector<1x16xf32>
    %157 = vector.shape_cast %156 : vector<1x16xf32> to vector<1x16x1xf32>
    %cst_60 = arith.constant dense<0.000000e+00> : vector<1x1xf32>
    %158 = vector.multi_reduction <add>, %157, %cst_60 [1] : vector<1x16x1xf32> to vector<1x1xf32>
    %159 = vector.shape_cast %158 : vector<1x1xf32> to vector<1x1x1xf32>
    %c0_61 = arith.constant 0 : index
    %c0_62 = arith.constant 0 : index
    %c0_63 = arith.constant 0 : index
    %160 = vector.load %arg4[%c0_61, %c0_62, %c0_63] : memref<1x1x1xf32, #tpu.memory_space<vmem>>, vector<1x1x1xf32>
    tpu.vector_store %arg4[%c0_61, %c0_62, %c0_63], %159 {strides = array<i32>} : memref<1x1x1xf32, #tpu.memory_space<vmem>>, vector<1x1x1xf32>,
    return
  }
  func.func @transform_0(%arg0: i32) -> (i32, i32, i32) {
    %c0_i32 = arith.constant 0 : i32
    %c0_i32_0 = arith.constant 0 : i32
    %c0_i32_1 = arith.constant 0 : i32
    return %arg0, %c0_i32, %c0_i32_0 : i32, i32, i32
  }
  func.func @transform_1(%arg0: i32) -> (i32, i32, i32, i32) {
    %c0_i32 = arith.constant 0 : i32
    %c0_i32_0 = arith.constant 0 : i32
    %c0_i32_1 = arith.constant 0 : i32
    %c0_i32_2 = arith.constant 0 : i32
    return %arg0, %c0_i32, %c0_i32_0, %c0_i32_1 : i32, i32, i32, i32
  }
  func.func @transform_2(%arg0: i32) -> (i32, i32, i32, i32) {
    %c0_i32 = arith.constant 0 : i32
    %c0_i32_0 = arith.constant 0 : i32
    %c0_i32_1 = arith.constant 0 : i32
    %c0_i32_2 = arith.constant 0 : i32
    return %arg0, %c0_i32, %c0_i32_0, %c0_i32_1 : i32, i32, i32, i32
  }
  func.func @transform_3(%arg0: i32) -> (i32, i32, i32) {
    %c0_i32 = arith.constant 0 : i32
    %c0_i32_0 = arith.constant 0 : i32
    %c0_i32_1 = arith.constant 0 : i32
    return %arg0, %c0_i32, %c0_i32_0 : i32, i32, i32
  }
}

</mosaic_0001>

<llo_original>
// kernel: tpu_custom_call.1
$region0: #{tpu_custom_call.1}
  #allocation0 [shape = 'u32[]', space=smem, size = 0x4, offset = 0x4, fixed_abs, tag = 'smem constant byte address 0x4 - core index']
  #allocation1 [shape = 'u32[144,128]{1,0:T(1,128)}', space=vmem, size = 0x12000, scoped, tag = 'internal scratch']
  %s0 = inlined_call_operand.vmem [shape: f32[2,1,1], index: 0, kind: input, shape index: {}]
  %s1 = inlined_call_operand.hbm [shape: f32[2,1,16,128], index: 1, kind: input, shape index: {}]
  %s2 = inlined_call_operand.hbm [shape: f32[2,1,16,128], index: 2, kind: input, shape index: {}]
  %s3 = inlined_call_operand.vmem [shape: f32[2,1,1], index: 3, kind: output, shape index: {}]
  %s4 = sld [smem:[#allocation0]]
  $region53: #{tpu_custom_call.1} parent=0
    _
  %s6 = ssub.s32 1, %s4
  %s7 = scalar_select 0, %s6, %s4
  $region1: #{tpu_custom_call.1} parent=0
    #allocation2 [shape = 'u8[16384]{0}', space=vmem, size = 0x4000, scoped, tag = 'input window, operand 1']
    #allocation3 [shape = 's32[2]{0}', space=sflag, size = 0x8, scoped, tag = 'scoped memory for tpu_custom_call.1']
    #allocation4 [shape = 'u8[16384]{0}', space=vmem, size = 0x4000, scoped, tag = 'input window, operand 2']
    #allocation5 [shape = 's32[2]{0}', space=sflag, size = 0x8, scoped, tag = 'scoped memory for tpu_custom_call.1']
    %8 = vsyncpa [#allocation3], 0
    %s9 = scalar_lea.sflag [#allocation3], 1
    %10 = vsyncpa %s9, 0
    %11 = vsyncpa [#allocation5], 0
    %s12 = scalar_lea.sflag [#allocation5], 1
    %13 = vsyncpa %s12, 0
    loop: start=0, step=1, limit=4
    $region2: #{tpu_custom_call.1} parent=1 // loop_pre_header
      _
    $region3: #{tpu_custom_call.1} parent=1 // loop_header
      %s15 = sphi 0, %s19
      %p16 = scmp.ge.s32.totalorder %s15, 4
      %s25 = sphi 0, %s27
      %s28 = sphi 0, %s25
      %s29 = sphi 0, %s28
      %s45 = sphi 0, %s29
      %s51 = sphi 0, %s53
      %s54 = sphi 0, %s51
      %s55 = sphi 0, %s54
      %s71 = sphi 0, %s55
      %s77 = sphi 0, %s79
      %s80 = sphi 0, %s77
      %s81 = sphi 0, %s80
      %s97 = sphi 0, %s81
      %s103 = sphi 0, %s105
      %s106 = sphi 0, %s103
      %s107 = sphi 0, %s106
      %s123 = sphi 0, %s107
    $region4: #{tpu_custom_call.1} parent=1 // loop_header_branch
      %18 = sbr.rel (%p16) target = $region8
    $region5: #{tpu_custom_call.1} parent=1 // loop_body
      %s20 = ssub.s32 %s15, 1
      %s21 = ssub.s32 %s15, 2
      %s22 = sadd.s32 %s15, 1
      %s23 = ssub.s32 %s15, %s22
      %p24 = scmp.eq.s32.totalorder %s23, 0
      %s26 = sadd.s32 %s25, 1
      %s27 = scalar_select %p24, %s25, %s26
      %p30 = pneg %p24
      %p31 = scmp.eq.s32.totalorder %s15, 1
      %p32 = por %p30, %p31
      %p33 = scmp.ne.s32.totalorder %s25, %s28
      %p34 = scmp.eq.s32.totalorder %s15, 0
      %p35 = por %p33, %p34
      %p36 = scmp.ne.s32.totalorder %s25, %s28
      %p37 = scmp.eq.s32.totalorder %s20, 1
      %p38 = por %p36, %p37
      %p39 = scmp.ne.s32.totalorder %s28, %s29
      %p40 = scmp.eq.s32.totalorder %s20, 0
      %p41 = por %p39, %p40
      %p42 = scmp.ne.s32.totalorder %s28, %s29
      %p43 = scmp.eq.s32.totalorder %s21, 1
      %p44 = por %p42, %p43
      %p46 = scmp.ne.s32.totalorder %s29, %s45
      %p47 = scmp.eq.s32.totalorder %s21, 0
      %p48 = por %p46, %p47
      %s49 = ssub.s32 %s15, %s22
      %p50 = scmp.eq.s32.totalorder %s49, 0
      %s52 = sadd.s32 %s51, 1
      %s53 = scalar_select %p50, %s51, %s52
      %p56 = pneg %p50
      %p57 = scmp.eq.s32.totalorder %s15, 1
      %p58 = por %p56, %p57
      %p59 = scmp.ne.s32.totalorder %s51, %s54
      %p60 = scmp.eq.s32.totalorder %s15, 0
      %p61 = por %p59, %p60
      %p62 = scmp.ne.s32.totalorder %s51, %s54
      %p63 = scmp.eq.s32.totalorder %s20, 1
      %p64 = por %p62, %p63
      %p65 = scmp.ne.s32.totalorder %s54, %s55
      %p66 = scmp.eq.s32.totalorder %s20, 0
      %p67 = por %p65, %p66
      %p68 = scmp.ne.s32.totalorder %s54, %s55
      %p69 = scmp.eq.s32.totalorder %s21, 1
      %p70 = por %p68, %p69
      %p72 = scmp.ne.s32.totalorder %s55, %s71
      %p73 = scmp.eq.s32.totalorder %s21, 0
      %p74 = por %p72, %p73
      %s75 = ssub.s32 %s15, %s22
      %p76 = scmp.eq.s32.totalorder %s75, 0
      %s78 = sadd.s32 %s77, 1
      %s79 = scalar_select %p76, %s77, %s78
      %p82 = pneg %p76
      %p83 = scmp.eq.s32.totalorder %s15, 1
      %p84 = por %p82, %p83
      %p85 = scmp.ne.s32.totalorder %s77, %s80
      %p86 = scmp.eq.s32.totalorder %s15, 0
      %p87 = por %p85, %p86
      %p88 = scmp.ne.s32.totalorder %s77, %s80
      %p89 = scmp.eq.s32.totalorder %s20, 1
      %p90 = por %p88, %p89
      %p91 = scmp.ne.s32.totalorder %s80, %s81
      %p92 = scmp.eq.s32.totalorder %s20, 0
      %p93 = por %p91, %p92
      %p94 = scmp.ne.s32.totalorder %s80, %s81
      %p95 = scmp.eq.s32.totalorder %s21, 1
      %p96 = por %p94, %p95
      %p98 = scmp.ne.s32.totalorder %s81, %s97
      %p99 = scmp.eq.s32.totalorder %s21, 0
      %p100 = por %p98, %p99
      %s101 = ssub.s32 %s15, %s22
      %p102 = scmp.eq.s32.totalorder %s101, 0
      %s104 = sadd.s32 %s103, 1
      %s105 = scalar_select %p102, %s103, %s104
      %p108 = pneg %p102
      %p109 = scmp.eq.s32.totalorder %s15, 1
      %p110 = por %p108, %p109
      %p111 = scmp.ne.s32.totalorder %s103, %s106
      %p112 = scmp.eq.s32.totalorder %s15, 0
      %p113 = por %p111, %p112
      %p114 = scmp.ne.s32.totalorder %s103, %s106
      %p115 = scmp.eq.s32.totalorder %s20, 1
      %p116 = por %p114, %p115
      %p117 = scmp.ne.s32.totalorder %s106, %s107
      %p118 = scmp.eq.s32.totalorder %s20, 0
      %p119 = por %p117, %p118
      %p120 = scmp.ne.s32.totalorder %s106, %s107
      %p121 = scmp.eq.s32.totalorder %s21, 1
      %p122 = por %p120, %p121
      %p124 = scmp.ne.s32.totalorder %s107, %s123
      %p125 = scmp.eq.s32.totalorder %s21, 0
      %p126 = por %p124, %p125
      %p127 = scmp.le.s32.totalorder 1, %s15
      %p128 = scmp.lt.s32.totalorder %s15, 3
      %p129 = pnand %p127, %p128
      %p130 = pneg %p129
      // Predicated region
      $region9: #{tpu_custom_call.1} parent=5 // pred_check
        _
      $region10: #{tpu_custom_call.1} parent=5 // pred_check_branch
        %132 = sbr.rel (%p129) target = $region12
      $region11: #{tpu_custom_call.1} parent=5 // pred_region
        %s133 = ssub.s32 %s15, 1
      $region12: #{tpu_custom_call.1} parent=5 // pred_fallthru
        _
      %p134 = scmp.lt.s32.totalorder %s15, 2
      // Predicated region
      $region13: #{tpu_custom_call.1} parent=5 // pred_check
        %p135 = pneg %p134
      $region14: #{tpu_custom_call.1} parent=5 // pred_check_branch
        %137 = sbr.rel (%p135) target = $region16
      $region15: #{tpu_custom_call.1} parent=5 // pred_region
        // Predicated region
        $region17: #{tpu_custom_call.1} parent=15 // pred_check
          %p138 = pneg %p35
        $region18: #{tpu_custom_call.1} parent=15 // pred_check_branch
          %140 = sbr.rel (%p138) target = $region20
        $region19: #{tpu_custom_call.1} parent=15 // pred_region
          %p141 = scmp.lt.s32.totalorder %s15, 1
          %s142 = scalar_select %p141, %s15, 1
          %s143 = scalar_lea.vmem %s0, %s142
        $region20: #{tpu_custom_call.1} parent=15 // pred_fallthru
          _
        // Predicated region
        $region21: #{tpu_custom_call.1} parent=15 // pred_check
          %p144 = pneg %p61
        $region22: #{tpu_custom_call.1} parent=15 // pred_check_branch
          %146 = sbr.rel (%p144) target = $region24
        $region23: #{tpu_custom_call.1} parent=15 // pred_region
          %s147 = sand.u32 %s51, 1
          %s148 = scalar_lea.sflag [#allocation3], %s147
          %s149 = sand.u32 %s51, 1
          %s150 = smul.addr %s149, 16
          %s151 = scalar_lea.vmem [#allocation2], %s150
          %s153 = ssub.s32 256, 256
          %154 = vsyncadd %s148, %s153
          %s155 = smul.addr %s15, 2
          %s156 = smul.addr %s155, 128
          %s157 = scalar_lea.hbm %s1, %s156
          %s158 = sshll.u32 %s151, 4
          %s159 = int_to_ptr.vmem [resolvable:$true] %s158
          %164 = dma.hbm_to_vmem [thread:$0]  %s157, 256, %s159, %s148, 128, 128, 8
        $region24: #{tpu_custom_call.1} parent=15 // pred_fallthru
          _
        // Predicated region
        $region25: #{tpu_custom_call.1} parent=15 // pred_check
          %p165 = pneg %p87
        $region26: #{tpu_custom_call.1} parent=15 // pred_check_branch
          %167 = sbr.rel (%p165) target = $region28
        $region27: #{tpu_custom_call.1} parent=15 // pred_region
          %s168 = sand.u32 %s77, 1
          %s169 = scalar_lea.sflag [#allocation5], %s168
          %s170 = sand.u32 %s77, 1
          %s171 = smul.addr %s170, 16
          %s172 = scalar_lea.vmem [#allocation4], %s171
          %s174 = ssub.s32 256, 256
          %175 = vsyncadd %s169, %s174
          %s176 = smul.addr %s15, 2
          %s177 = smul.addr %s176, 128
          %s178 = scalar_lea.hbm %s2, %s177
          %s179 = sshll.u32 %s172, 4
          %s180 = int_to_ptr.vmem [resolvable:$true] %s179
          %185 = dma.hbm_to_vmem [thread:$0]  %s178, 256, %s180, %s169, 128, 128, 8
        $region28: #{tpu_custom_call.1} parent=15 // pred_fallthru
          _
      $region16: #{tpu_custom_call.1} parent=5 // pred_fallthru
        _
      %p186 = scmp.le.s32.totalorder 1, %s15
      %p187 = scmp.lt.s32.totalorder %s15, 3
      %p188 = pnand %p186, %p187
      %p189 = pneg %p188
      // Predicated region
      $region29: #{tpu_custom_call.1} parent=5 // pred_check
        _
      $region30: #{tpu_custom_call.1} parent=5 // pred_check_branch
        %191 = sbr.rel (%p188) target = $region32
      $region31: #{tpu_custom_call.1} parent=5 // pred_region
        %s192 = ssub.s32 %s15, 1
        %s193 = sand.u32 %s54, 1
        %s194 = scalar_lea.sflag [#allocation3], %s193
        %s195 = sand.u32 %s54, 1
        %s196 = smul.addr %s195, 16
        %s197 = scalar_lea.vmem [#allocation2], %s196
        // Predicated region
        $region33: #{tpu_custom_call.1} parent=31 // pred_check
          %p198 = pneg %p67
        $region34: #{tpu_custom_call.1} parent=31 // pred_check_branch
          %200 = sbr.rel (%p198) target = $region36
        $region35: #{tpu_custom_call.1} parent=31 // pred_region
          %201 = dma.done %s194, 256
        $region36: #{tpu_custom_call.1} parent=31 // pred_fallthru
          _
        %s202 = sand.u32 %s80, 1
        %s203 = scalar_lea.sflag [#allocation5], %s202
        %s204 = sand.u32 %s80, 1
        %s205 = smul.addr %s204, 16
        %s206 = scalar_lea.vmem [#allocation4], %s205
        // Predicated region
        $region37: #{tpu_custom_call.1} parent=31 // pred_check
          %p207 = pneg %p93
        $region38: #{tpu_custom_call.1} parent=31 // pred_check_branch
          %209 = sbr.rel (%p207) target = $region40
        $region39: #{tpu_custom_call.1} parent=31 // pred_region
          %210 = dma.done %s203, 256
        $region40: #{tpu_custom_call.1} parent=31 // pred_fallthru
          _
        %p211 = scmp.lt.s32.totalorder %s20, 1
        %s212 = scalar_select %p211, %s20, 1
        %s213 = scalar_lea.vmem %s0, %s212
        %p214 = pneg %p41
        %p215 = pneg %p38
        %s216 = sand.u32 %s54, 1
        %s217 = scalar_lea.sflag [#allocation3], %s216
        %s218 = sand.u32 %s54, 1
        %s219 = smul.addr %s218, 16
        %s220 = scalar_lea.vmem [#allocation2], %s219
        %p221 = pneg %p67
        %p222 = pneg %p64
        %s223 = sand.u32 %s80, 1
        %s224 = scalar_lea.sflag [#allocation5], %s223
        %s225 = sand.u32 %s80, 1
        %s226 = smul.addr %s225, 16
        %s227 = scalar_lea.vmem [#allocation4], %s226
        %p228 = pneg %p93
        %p229 = pneg %p90
        %p230 = pneg %p119
        %p231 = pneg %p116
        %p232 = scmp.lt.s32.totalorder %s20, 1
        %s233 = scalar_select %p232, %s20, 1
        %s234 = scalar_lea.vmem %s3, %s233
        %p235 = scmp.lt.s32.totalorder %s20, 1
        %s236 = scalar_select %p235, %s20, 1
        %s237 = scalar_lea.vmem %s0, %s236
        %p238 = scmp.lt.s32.totalorder %s20, 1
        %s239 = scalar_select %p238, %s20, 1
        %s240 = scalar_lea.vmem %s3, %s239
        %v241 = vld [vmem:[%s197] sm:$0xff]
        %v242 = vld [vmem:[%s197 + $0x8] sm:$0xff]
        %v243 = vld [vmem:[%s206] sm:$0xff]
        %v244 = vld [vmem:[%s206 + $0x8] sm:$0xff]
        %v245 = vld [vmem:[%s237] sm:$0x1]
        %v246 = vmul.f32 %v245, 0.01
        %v247 = vmul.f32 %v246, %v246
        %v248 = vmul.f32 %v245, 0.03
        %v249 = vmul.f32 %v248, %v248
        %v250 = vrot.slane %v241, 1
        %v251 = vrot.slane %v242, 1
        %v252 = vlaneseq
        %v253 = vshrl.u32 %v252, 7
        %vm254 = vcmp.lt.s32.totalorder %v253, 7
        %v255 = vsel %vm254, %v250, %v251
        %v256 = vsel %vm254, %v251, %v250
        %v257 = vadd.f32 %v241, %v255
        %v258 = vadd.f32 %v242, %v256
        %v259 = vrot.slane %v257, 2
        %v260 = vrot.slane %v258, 2
        %vm261 = vcmp.lt.s32.totalorder %v253, 6
        %v262 = vsel %vm261, %v259, %v260
        %v263 = vsel %vm261, %v260, %v259
        %v264 = vadd.f32 %v257, %v262
        %v265 = vadd.f32 %v258, %v263
        %v266 = vrot.slane %v257, 4
        %v267 = vrot.slane %v258, 4
        %vm268 = vcmp.lt.s32.totalorder %v253, 4
        %v269 = vsel %vm268, %v266, %v267
        %v270 = vsel %vm268, %v267, %v266
        %v271 = vadd.f32 %v264, %v269
        %v272 = vadd.f32 %v265, %v270
        %v273 = vrot.slane %v241, 6
        %v274 = vrot.slane %v242, 6
        %vm275 = vcmp.lt.s32.totalorder %v253, 2
        %v276 = vsel %vm275, %v273, %v274
        %v277 = vsel %vm275, %v274, %v273
        %v278 = vadd.f32 %v271, %v276
        %v279 = vadd.f32 %v272, %v277
        %280 = vrot.lane.b32.xlu0 %v278, 127
        %v281 = vpop.permute.xlu0 %280
        %282 = vrot.lane.b32.xlu0 %v279, 127
        %v283 = vpop.permute.xlu0 %282
        %v284 = vadd.f32 %v278, %v281
        %v285 = vadd.f32 %v279, %v283
        %286 = vrot.lane.b32.xlu0 %v284, 126
        %v287 = vpop.permute.xlu0 %286
        %288 = vrot.lane.b32.xlu0 %v285, 126
        %v289 = vpop.permute.xlu0 %288
        %v290 = vadd.f32 %v284, %v287
        %v291 = vadd.f32 %v285, %v289
        %292 = vrot.lane.b32.xlu0 %v284, 124
        %v293 = vpop.permute.xlu0 %292
        %294 = vrot.lane.b32.xlu0 %v285, 124
        %v295 = vpop.permute.xlu0 %294
        %v296 = vadd.f32 %v290, %v293
        %v297 = vadd.f32 %v291, %v295
        %298 = vrot.lane.b32.xlu0 %v278, 122
        %v299 = vpop.permute.xlu0 %298
        %300 = vrot.lane.b32.xlu0 %v279, 122
        %v301 = vpop.permute.xlu0 %300
        %v302 = vadd.f32 %v296, %v299
        %v303 = vadd.f32 %v297, %v301
        %v304 = vmul.f32 %v302, 0.020408163
        %v305 = vmul.f32 %v303, 0.020408163
        %v306 = vrot.slane %v243, 1
        %v307 = vrot.slane %v244, 1
        %v308 = vsel %vm254, %v306, %v307
        %v309 = vsel %vm254, %v307, %v306
        %v310 = vadd.f32 %v243, %v308
        %v311 = vadd.f32 %v244, %v309
        %v312 = vrot.slane %v310, 2
        %v313 = vrot.slane %v311, 2
        %v314 = vsel %vm261, %v312, %v313
        %v315 = vsel %vm261, %v313, %v312
        %v316 = vadd.f32 %v310, %v314
        %v317 = vadd.f32 %v311, %v315
        %v318 = vrot.slane %v310, 4
        %v319 = vrot.slane %v311, 4
        %v320 = vsel %vm268, %v318, %v319
        %v321 = vsel %vm268, %v319, %v318
        %v322 = vadd.f32 %v316, %v320
        %v323 = vadd.f32 %v317, %v321
        %v324 = vrot.slane %v243, 6
        %v325 = vrot.slane %v244, 6
        %v326 = vsel %vm275, %v324, %v325
        %v327 = vsel %vm275, %v325, %v324
        %v328 = vadd.f32 %v322, %v326
        %v329 = vadd.f32 %v323, %v327
        %330 = vrot.lane.b32.xlu0 %v328, 127
        %v331 = vpop.permute.xlu0 %330
        %332 = vrot.lane.b32.xlu0 %v329, 127
        %v333 = vpop.permute.xlu0 %332
        %v334 = vadd.f32 %v328, %v331
        %v335 = vadd.f32 %v329, %v333
        %336 = vrot.lane.b32.xlu0 %v334, 126
        %v337 = vpop.permute.xlu0 %336
        %338 = vrot.lane.b32.xlu0 %v335, 126
        %v339 = vpop.permute.xlu0 %338
        %v340 = vadd.f32 %v334, %v337
        %v341 = vadd.f32 %v335, %v339
        %342 = vrot.lane.b32.xlu0 %v334, 124
        %v343 = vpop.permute.xlu0 %342
        %344 = vrot.lane.b32.xlu0 %v335, 124
        %v345 = vpop.permute.xlu0 %344
        %v346 = vadd.f32 %v340, %v343
        %v347 = vadd.f32 %v341, %v345
        %348 = vrot.lane.b32.xlu0 %v328, 122
        %v349 = vpop.permute.xlu0 %348
        %350 = vrot.lane.b32.xlu0 %v329, 122
        %v351 = vpop.permute.xlu0 %350
        %v352 = vadd.f32 %v346, %v349
        %v353 = vadd.f32 %v347, %v351
        %v354 = vmul.f32 %v352, 0.020408163
        %v355 = vmul.f32 %v353, 0.020408163
        %v356 = vmul.f32 %v241, %v241
        %v357 = vmul.f32 %v242, %v242
        %v358 = vrot.slane %v356, 1
        %v359 = vrot.slane %v357, 1
        %v360 = vsel %vm254, %v358, %v359
        %v361 = vsel %vm254, %v359, %v358
        %v362 = vadd.f32 %v356, %v360
        %v363 = vadd.f32 %v357, %v361
        %v364 = vrot.slane %v362, 2
        %v365 = vrot.slane %v363, 2
        %v366 = vsel %vm261, %v364, %v365
        %v367 = vsel %vm261, %v365, %v364
        %v368 = vadd.f32 %v362, %v366
        %v369 = vadd.f32 %v363, %v367
        %v370 = vrot.slane %v362, 4
        %v371 = vrot.slane %v363, 4
        %v372 = vsel %vm268, %v370, %v371
        %v373 = vsel %vm268, %v371, %v370
        %v374 = vadd.f32 %v368, %v372
        %v375 = vadd.f32 %v369, %v373
        %v376 = vrot.slane %v356, 6
        %v377 = vrot.slane %v357, 6
        %v378 = vsel %vm275, %v376, %v377
        %v379 = vsel %vm275, %v377, %v376
        %v380 = vadd.f32 %v374, %v378
        %v381 = vadd.f32 %v375, %v379
        %382 = vrot.lane.b32.xlu0 %v380, 127
        %v383 = vpop.permute.xlu0 %382
        %384 = vrot.lane.b32.xlu0 %v381, 127
        %v385 = vpop.permute.xlu0 %384
        %v386 = vadd.f32 %v380, %v383
        %v387 = vadd.f32 %v381, %v385
        %388 = vrot.lane.b32.xlu0 %v386, 126
        %v389 = vpop.permute.xlu0 %388
        %390 = vrot.lane.b32.xlu0 %v387, 126
        %v391 = vpop.permute.xlu0 %390
        %v392 = vadd.f32 %v386, %v389
        %v393 = vadd.f32 %v387, %v391
        %394 = vrot.lane.b32.xlu0 %v386, 124
        %v395 = vpop.permute.xlu0 %394
        %396 = vrot.lane.b32.xlu0 %v387, 124
        %v397 = vpop.permute.xlu0 %396
        %v398 = vadd.f32 %v392, %v395
        %v399 = vadd.f32 %v393, %v397
        %400 = vrot.lane.b32.xlu0 %v380, 122
        %v401 = vpop.permute.xlu0 %400
        %402 = vrot.lane.b32.xlu0 %v381, 122
        %v403 = vpop.permute.xlu0 %402
        %v404 = vadd.f32 %v398, %v401
        %v405 = vadd.f32 %v399, %v403
        %v406 = vmul.f32 %v404, 0.020408163
        %v407 = vmul.f32 %v405, 0.020408163
        %v408 = vmul.f32 %v243, %v243
        %v409 = vmul.f32 %v244, %v244
        %v410 = vrot.slane %v408, 1
        %v411 = vrot.slane %v409, 1
        %v412 = vsel %vm254, %v410, %v411
        %v413 = vsel %vm254, %v411, %v410
        %v414 = vadd.f32 %v408, %v412
        %v415 = vadd.f32 %v409, %v413
        %v416 = vrot.slane %v414, 2
        %v417 = vrot.slane %v415, 2
        %v418 = vsel %vm261, %v416, %v417
        %v419 = vsel %vm261, %v417, %v416
        %v420 = vadd.f32 %v414, %v418
        %v421 = vadd.f32 %v415, %v419
        %v422 = vrot.slane %v414, 4
        %v423 = vrot.slane %v415, 4
        %v424 = vsel %vm268, %v422, %v423
        %v425 = vsel %vm268, %v423, %v422
        %v426 = vadd.f32 %v420, %v424
        %v427 = vadd.f32 %v421, %v425
        %v428 = vrot.slane %v408, 6
        %v429 = vrot.slane %v409, 6
        %v430 = vsel %vm275, %v428, %v429
        %v431 = vsel %vm275, %v429, %v428
        %v432 = vadd.f32 %v426, %v430
        %v433 = vadd.f32 %v427, %v431
        %434 = vrot.lane.b32.xlu0 %v432, 127
        %v435 = vpop.permute.xlu0 %434
        %436 = vrot.lane.b32.xlu0 %v433, 127
        %v437 = vpop.permute.xlu0 %436
        %v438 = vadd.f32 %v432, %v435
        %v439 = vadd.f32 %v433, %v437
        %440 = vrot.lane.b32.xlu0 %v438, 126
        %v441 = vpop.permute.xlu0 %440
        %442 = vrot.lane.b32.xlu0 %v439, 126
        %v443 = vpop.permute.xlu0 %442
        %v444 = vadd.f32 %v438, %v441
        %v445 = vadd.f32 %v439, %v443
        %446 = vrot.lane.b32.xlu0 %v438, 124
        %v447 = vpop.permute.xlu0 %446
        %448 = vrot.lane.b32.xlu0 %v439, 124
        %v449 = vpop.permute.xlu0 %448
        %v450 = vadd.f32 %v444, %v447
        %v451 = vadd.f32 %v445, %v449
        %452 = vrot.lane.b32.xlu0 %v432, 122
        %v453 = vpop.permute.xlu0 %452
        %454 = vrot.lane.b32.xlu0 %v433, 122
        %v455 = vpop.permute.xlu0 %454
        %v456 = vadd.f32 %v450, %v453
        %v457 = vadd.f32 %v451, %v455
        %v458 = vmul.f32 %v456, 0.020408163
        %v459 = vmul.f32 %v457, 0.020408163
        %v460 = vmul.f32 %v241, %v243
        %v461 = vmul.f32 %v242, %v244
        %v462 = vrot.slane %v460, 1
        %v463 = vrot.slane %v461, 1
        %v464 = vsel %vm254, %v462, %v463
        %v465 = vsel %vm254, %v463, %v462
        %v466 = vadd.f32 %v460, %v464
        %v467 = vadd.f32 %v461, %v465
        %v468 = vrot.slane %v466, 2
        %v469 = vrot.slane %v467, 2
        %v470 = vsel %vm261, %v468, %v469
        %v471 = vsel %vm261, %v469, %v468
        %v472 = vadd.f32 %v466, %v470
        %v473 = vadd.f32 %v467, %v471
        %v474 = vrot.slane %v466, 4
        %v475 = vrot.slane %v467, 4
        %v476 = vsel %vm268, %v474, %v475
        %v477 = vsel %vm268, %v475, %v474
        %v478 = vadd.f32 %v472, %v476
        %v479 = vadd.f32 %v473, %v477
        %v480 = vrot.slane %v460, 6
        %v481 = vrot.slane %v461, 6
        %v482 = vsel %vm275, %v480, %v481
        %v483 = vsel %vm275, %v481, %v480
        %v484 = vadd.f32 %v478, %v482
        %v485 = vadd.f32 %v479, %v483
        %486 = vrot.lane.b32.xlu0 %v484, 127
        %v487 = vpop.permute.xlu0 %486
        %488 = vrot.lane.b32.xlu0 %v485, 127
        %v489 = vpop.permute.xlu0 %488
        %v490 = vadd.f32 %v484, %v487
        %v491 = vadd.f32 %v485, %v489
        %492 = vrot.lane.b32.xlu0 %v490, 126
        %v493 = vpop.permute.xlu0 %492
        %494 = vrot.lane.b32.xlu0 %v491, 126
        %v495 = vpop.permute.xlu0 %494
        %v496 = vadd.f32 %v490, %v493
        %v497 = vadd.f32 %v491, %v495
        %498 = vrot.lane.b32.xlu0 %v490, 124
        %v499 = vpop.permute.xlu0 %498
        %500 = vrot.lane.b32.xlu0 %v491, 124
        %v501 = vpop.permute.xlu0 %500
        %v502 = vadd.f32 %v496, %v499
        %v503 = vadd.f32 %v497, %v501
        %504 = vrot.lane.b32.xlu0 %v484, 122
        %v505 = vpop.permute.xlu0 %504
        %506 = vrot.lane.b32.xlu0 %v485, 122
        %v507 = vpop.permute.xlu0 %506
        %v508 = vadd.f32 %v502, %v505
        %v509 = vadd.f32 %v503, %v507
        %v510 = vmul.f32 %v508, 0.020408163
        %v511 = vmul.f32 %v509, 0.020408163
        %v512 = vmul.f32 %v304, %v304
        %v513 = vmul.f32 %v305, %v305
        %v514 = vsub.f32 %v406, %v512
        %v515 = vsub.f32 %v407, %v513
        %v516 = vmul.f32 %v514, 1.0208334
        %v517 = vmul.f32 %v515, 1.0208334
        %v518 = vmul.f32 %v354, %v354
        %v519 = vmul.f32 %v355, %v355
        %v520 = vsub.f32 %v458, %v518
        %v521 = vsub.f32 %v459, %v519
        %v522 = vmul.f32 %v520, 1.0208334
        %v523 = vmul.f32 %v521, 1.0208334
        %v524 = vmul.f32 %v304, %v354
        %v525 = vmul.f32 %v305, %v355
        %v526 = vsub.f32 %v510, %v524
        %v527 = vsub.f32 %v511, %v525
        %v528 = vmul.f32 %v526, 1.0208334
        %v529 = vmul.f32 %v527, 1.0208334
        %v530 = vmul.f32 %v304, 2.0
        %v531 = vmul.f32 %v305, 2.0
        %v532 = vmul.f32 %v530, %v354
        %v533 = vmul.f32 %v531, %v355
        %v535 = vlaneseq
        %v536 = vshrl.u32 %v535, 7
        %v537 = vsub.s32 0, %v536
        %v538 = vrot.slane %v247, %v537
        %539 = vset.pattern.permute.xlu0 0
        %540 = vperm.xlu0 %539, %v538
        %v541 = vpop.permute.xlu0 %540
        %v543 = vadd.f32 %v532, %v541
        %v544 = vadd.f32 %v533, %v541
        %v545 = vmul.f32 %v528, 2.0
        %v546 = vmul.f32 %v529, 2.0
        %v548 = vlaneseq
        %v549 = vshrl.u32 %v548, 7
        %v550 = vsub.s32 0, %v549
        %v551 = vrot.slane %v249, %v550
        %552 = vset.pattern.permute.xlu0 0
        %553 = vperm.xlu0 %552, %v551
        %v554 = vpop.permute.xlu0 %553
        %v556 = vadd.f32 %v545, %v554
        %v557 = vadd.f32 %v546, %v554
        %v558 = vadd.f32 %v512, %v518
        %v559 = vadd.f32 %v513, %v519
        %v560 = vadd.f32 %v558, %v541
        %v561 = vadd.f32 %v559, %v541
        %v562 = vadd.f32 %v516, %v522
        %v563 = vadd.f32 %v517, %v523
        %v564 = vadd.f32 %v562, %v554
        %v565 = vadd.f32 %v563, %v554
        %v566 = vadd.s32 %v253, 8
        %v567 = vlaneseq
        %v568 = vand.u32 %v567, 127
        %vm569 = vcmp.lt.s32.totalorder %v253, 10
        %vm570 = vcmp.lt.s32.totalorder %v566, 10
        %vm571 = vcmp.lt.s32.totalorder %v568, 122
        %vm572 = vmand %vm569, %vm571
        %vm573 = vmand %vm570, %vm571
        %v574 = vmul.f32 %v543, %v556
        %v575 = vmul.f32 %v544, %v557
        %v576 = vsel %vm572, %v574, 0.0
        %v577 = vsel %vm573, %v575, 0.0
        %v578 = vmul.f32 %v560, %v564
        %v579 = vmul.f32 %v561, %v565
        %v580 = vsel %vm572, %v578, 1.0
        %v581 = vsel %vm573, %v579, 1.0
        %v582 = vrcp.pop %v580
        %v583 = vrcp.pop %v581
        %v584 = vmul.f32 %v580, %v582
        %v585 = vmul.f32 %v581, %v583
        %v586 = vsub.f32 2.0, %v584
        %v587 = vsub.f32 2.0, %v585
        %v588 = vmul.f32 %v582, %v586
        %v589 = vmul.f32 %v583, %v587
        %v590 = vmul.f32 %v580, %v588
        %v591 = vmul.f32 %v581, %v589
        %v592 = vsub.f32 2.0, %v590
        %v593 = vsub.f32 2.0, %v591
        %v594 = vmul.f32 %v588, %v592
        %v595 = vmul.f32 %v589, %v593
        %v596 = vmul.f32 %v576, %v594
        %v597 = vmul.f32 %v577, %v595
        %598 = vadd.xlane.f32.xlu0 %v596
        %v599 = vpop.xlane.xlu0 %598
        %600 = vadd.xlane.f32.xlu0 %v597
        %v601 = vpop.xlane.xlu0 %600
        %v602 = vadd.f32 %v599, %v601
        %v603 = vrot.slane %v602, 4
        %v604 = vadd.f32 %v602, %v603
        %v605 = vrot.slane %v604, 2
        %v606 = vadd.f32 %v604, %v605
        %v607 = vrot.slane %v606, 1
        %v608 = vadd.f32 %v606, %v607
        %vm609 = vcmask 0
        %610 = vst.msk [vmem:[%s240] sm:$0x1] %vm609, %v608
        %p611 = scmp.lt.s32.totalorder %s20, 1
        %s612 = scalar_select %p611, %s20, 1
        %s613 = scalar_lea.vmem %s3, %s612
        // Predicated region
        $region41: #{tpu_custom_call.1} parent=31 // pred_check
          %p614 = pneg %p116
        $region42: #{tpu_custom_call.1} parent=31 // pred_check_branch
          %616 = sbr.rel (%p614) target = $region44
        $region43: #{tpu_custom_call.1} parent=31 // pred_region
          _
        $region44: #{tpu_custom_call.1} parent=31 // pred_fallthru
          _
      $region32: #{tpu_custom_call.1} parent=5 // pred_fallthru
        _
      %p617 = scmp.le.s32.totalorder 2, %s15
      // Predicated region
      $region45: #{tpu_custom_call.1} parent=5 // pred_check
        %p618 = pneg %p617
      $region46: #{tpu_custom_call.1} parent=5 // pred_check_branch
        %620 = sbr.rel (%p618) target = $region48
      $region47: #{tpu_custom_call.1} parent=5 // pred_region
        %s621 = ssub.s32 %s15, 2
        // Predicated region
        $region49: #{tpu_custom_call.1} parent=47 // pred_check
          %p622 = pneg %p122
        $region50: #{tpu_custom_call.1} parent=47 // pred_check_branch
          %624 = sbr.rel (%p622) target = $region52
        $region51: #{tpu_custom_call.1} parent=47 // pred_region
          %p625 = scmp.lt.s32.totalorder %s21, 1
          %s626 = scalar_select %p625, %s21, 1
          %s627 = scalar_lea.vmem %s3, %s626
        $region52: #{tpu_custom_call.1} parent=47 // pred_fallthru
          _
      $region48: #{tpu_custom_call.1} parent=5 // pred_fallthru
        _
    $region6: #{tpu_custom_call.1} parent=1 // loop_footer
      %s19 = sadd.s32 1, %s15
    $region7: #{tpu_custom_call.1} parent=1 // loop_footer_branch
      %14 = sbr.rel target = $region3
    $region8: #{tpu_custom_call.1} parent=1 // loop_exit
      _
    %628 = vsyncpa [#allocation3], 1
    %s629 = scalar_lea.sflag [#allocation3], 1
    %630 = vsyncpa %s629, 1
    %631 = vsyncpa [#allocation5], 1
    %s632 = scalar_lea.sflag [#allocation5], 1
    %633 = vsyncpa %s632, 1

</llo_original>
